<compile_context>
chip_gen: v7x
topology: tpu7x:2x2x1
jax: 0.10.0
libtpu: 0.0.40
codegen_flags: <defaults>
</compile_context>

<pallas_src>
import functools

import numpy as np

import jax
import jax.numpy as jnp
from jax.experimental import pallas as pl
from jax.experimental.pallas import tpu as pltpu


def _round_up(x, m):
    return ((x + m - 1) // m) * m


def _embedding_kernel(freq_ref, phase_ref, x_ref, o_ref, *, n_funcs):
    # x_ref:     (C, tn)            features on sublanes, batch on lanes.
    # freq_ref:  (n_funcs * C, 1)   per-output-row frequency.
    # phase_ref: (n_funcs * C, 1)   0 for sin rows, pi/2 for cos rows.
    # o_ref:     (C * (n_funcs + 1), tn)
    x = x_ref[...].astype(jnp.float32)                       # (C, tn)
    # Replicate x along the sublane axis once per (freq, func) pair.
    xr = jnp.concatenate([x] * n_funcs, axis=0)              # (n_funcs*C, tn)
    # sin(f*x + 0) = sin(f*x);  sin(f*x + pi/2) = cos(f*x)
    z = xr * freq_ref[...] + phase_ref[...]
    out = jnp.concatenate([x, jnp.sin(z)], axis=0)           # (out_ch, tn)
    o_ref[...] = out.astype(o_ref.dtype)


def nerf_embedding(x, freq_bands, *, tn=4096):
    """Positional encoding: cat([x, sin(f0 x), cos(f0 x), ...], -1).

    x: (B, C) -> (B, C * (2 * len(freq_bands) + 1))
    """
    B, C = x.shape
    freq_bands = np.asarray(freq_bands, dtype=np.float32)
    n_freqs = int(freq_bands.shape[0])
    n_funcs = 2 * n_freqs
    out_ch = C * (n_funcs + 1)

    # Lane-dense layout: batch maps to the 128-wide lane axis.  Clamp the lane
    # tile for small B (single block), pad B up to a multiple of the tile so
    # ragged batches work; padded rows are sliced off at the end.
    tn = min(tn, _round_up(B, 128))
    b_pad = _round_up(B, tn)
    xt = jnp.pad(x, ((0, b_pad - B), (0, 0))).T              # (C, b_pad)

    # Per-output-row constants (row order matches the PyTorch concat order:
    # [sin f0 | cos f0 | sin f1 | cos f1 | ...], each block C rows wide).
    grp = np.arange(n_funcs * C) // C                        # (freq, func) pair id
    freq_col = np.repeat(freq_bands, 2 * C).reshape(-1, 1).astype(np.float32)
    phase_col = ((grp % 2).astype(np.float32) * np.float32(np.pi / 2)).reshape(-1, 1)

    kernel = functools.partial(_embedding_kernel, n_funcs=n_funcs)

    out_t = pl.pallas_call(
        kernel,
        out_shape=jax.ShapeDtypeStruct((out_ch, b_pad), x.dtype),
        grid_spec=pltpu.PrefetchScalarGridSpec(
            num_scalar_prefetch=0,
            grid=(b_pad // tn,),
            in_specs=[
                # tiny per-row constants, resident every step
                pl.BlockSpec((n_funcs * C, 1), lambda i: (0, 0)),
                pl.BlockSpec((n_funcs * C, 1), lambda i: (0, 0)),
                # x^T: full feature dim, batch tiled over the grid (lanes)
                pl.BlockSpec((C, tn), lambda i: (0, i)),
            ],
            out_specs=pl.BlockSpec((out_ch, tn), lambda i: (0, i)),
        ),
        compiler_params=pltpu.CompilerParams(
            dimension_semantics=("parallel",),
        ),
    )(jnp.asarray(freq_col), jnp.asarray(phase_col), xt)

    return out_t.T[:B]


if __name__ == "__main__":
    key = jax.random.PRNGKey(0)

    # Small shapes consistent with the module: B=8 points, in_channels=3 (xyz),
    # N_freqs=4, logscale=True  ->  out_channels = 3 * (2*4 + 1) = 27.
    B, in_channels, n_freqs = 8, 3, 4
    freq_bands = 2.0 ** np.linspace(0.0, n_freqs - 1, n_freqs)   # logscale

    x = jax.random.normal(key, (B, in_channels), dtype=jnp.float32)

    out = nerf_embedding(x, freq_bands)
    out = jax.block_until_ready(out)

    # Plain-JAX reference (same math as the PyTorch forward).
    parts = [x]
    for f in freq_bands:
        parts.append(jnp.sin(jnp.float32(f) * x))
        parts.append(jnp.cos(jnp.float32(f) * x))
    ref = jnp.concatenate(parts, axis=-1)

    assert out.shape == (B, in_channels * (2 * n_freqs + 1))
    assert jnp.allclose(out, ref, atol=1e-4, rtol=1e-4), "mismatch vs reference"

    print("KERNEL_OK")
</pallas_src>

<mosaic_0001>
module attributes {stable_mosaic.version = 11 : i64} {
  func.func @_embedding_kernel(%arg0: i32, %arg1: memref<24x1xf32, #tpu.memory_space<vmem>>, %arg2: memref<24x1xf32, #tpu.memory_space<vmem>>, %arg3: memref<3x128xf32, #tpu.memory_space<vmem>>, %arg4: memref<27x128xf32, #tpu.memory_space<vmem>>) attributes {dimension_semantics = [#tpu.dimension_semantics<parallel>], iteration_bounds = array<i64: 1>, scalar_prefetch = 0 : i64, scratch_operands = 0 : i64, tpu.core_type = #tpu.core_type<tc>, window_params = [{pipeline_mode = #tpu.pipeline_mode<synchronous>, transform_indices = @transform_0, window_bounds = array<i64: 24, 1>}, {pipeline_mode = #tpu.pipeline_mode<synchronous>, transform_indices = @transform_1, window_bounds = array<i64: 24, 1>}, {transform_indices = @transform_2, window_bounds = array<i64: 3, 128>}, {transform_indices = @transform_3, window_bounds = array<i64: 27, 128>}]} {
    %c0 = arith.constant 0 : index
    %c0_0 = arith.constant 0 : index
    %0 = vector.load %arg3[%c0, %c0_0] : memref<3x128xf32, #tpu.memory_space<vmem>>, vector<3x128xf32>
    %1 = tpu.concatenate %0, %0, %0, %0, %0, %0, %0, %0 in 0 : vector<3x128xf32>, vector<3x128xf32>, vector<3x128xf32>, vector<3x128xf32>, vector<3x128xf32>, vector<3x128xf32>, vector<3x128xf32>, vector<3x128xf32> -> vector<24x128xf32>
    %c0_1 = arith.constant 0 : index
    %c0_2 = arith.constant 0 : index
    %2 = vector.load %arg1[%c0_1, %c0_2] : memref<24x1xf32, #tpu.memory_space<vmem>>, vector<24x1xf32>
    %3 = vector.broadcast %2 : vector<24x1xf32> to vector<24x128xf32>
    %4 = arith.mulf %1, %3 : vector<24x128xf32>
    %c0_3 = arith.constant 0 : index
    %c0_4 = arith.constant 0 : index
    %5 = vector.load %arg2[%c0_3, %c0_4] : memref<24x1xf32, #tpu.memory_space<vmem>>, vector<24x1xf32>
    %6 = vector.broadcast %5 : vector<24x1xf32> to vector<24x128xf32>
    %7 = arith.addf %4, %6 : vector<24x128xf32>
    %8 = math.sin %7 : vector<24x128xf32>
    %9 = tpu.concatenate %0, %8 in 0 : vector<3x128xf32>, vector<24x128xf32> -> vector<27x128xf32>
    %c0_5 = arith.constant 0 : index
    %c0_6 = arith.constant 0 : index
    %10 = vector.load %arg4[%c0_5, %c0_6] : memref<27x128xf32, #tpu.memory_space<vmem>>, vector<27x128xf32>
    tpu.vector_store %arg4[%c0_5, %c0_6], %9 {strides = array<i32>} : memref<27x128xf32, #tpu.memory_space<vmem>>, vector<27x128xf32>,
    return
  }
  func.func @transform_0(%arg0: i32) -> (i32, i32) {
    %c0_i32 = arith.constant 0 : i32
    %c0_i32_0 = arith.constant 0 : i32
    %c0_i32_1 = arith.constant 0 : i32
    return %c0_i32, %c0_i32_0 : i32, i32
  }
  func.func @transform_1(%arg0: i32) -> (i32, i32) {
    %c0_i32 = arith.constant 0 : i32
    %c0_i32_0 = arith.constant 0 : i32
    %c0_i32_1 = arith.constant 0 : i32
    return %c0_i32, %c0_i32_0 : i32, i32
  }
  func.func @transform_2(%arg0: i32) -> (i32, i32) {
    %c0_i32 = arith.constant 0 : i32
    %c0_i32_0 = arith.constant 0 : i32
    return %c0_i32, %arg0 : i32, i32
  }
  func.func @transform_3(%arg0: i32) -> (i32, i32) {
    %c0_i32 = arith.constant 0 : i32
    %c0_i32_0 = arith.constant 0 : i32
    return %c0_i32, %arg0 : i32, i32
  }
}

</mosaic_0001>

<llo_original>
// kernel: tpu_custom_call.1
$region0: #{tpu_custom_call.1}
  #allocation0 [shape = 'u32[]', space=smem, size = 0x4, offset = 0x4, fixed_abs, tag = 'smem constant byte address 0x4 - core index']
  #allocation1 [shape = 'u32[144,128]{1,0:T(1,128)}', space=vmem, size = 0x12000, scoped, tag = 'internal scratch']
  %s0 = inlined_call_operand.vmem [shape: f32[24,1], index: 0, kind: input, shape index: {}]
  %s1 = inlined_call_operand.vmem [shape: f32[24,1], index: 1, kind: input, shape index: {}]
  %s2 = inlined_call_operand.vmem [shape: f32[3,128], index: 2, kind: input, shape index: {}]
  %s3 = inlined_call_operand.hbm [shape: f32[27,128], index: 3, kind: output, shape index: {}]
  %s4 = sld [smem:[#allocation0]]
  $region22: #{tpu_custom_call.1} parent=0
    _
  %s6 = ssub.s32 1, %s4
  %s7 = scalar_select 0, %s6, %s4
  $region1: #{tpu_custom_call.1} parent=0
    #allocation2 [shape = 'u8[16384]{0}', space=vmem, size = 0x4000, scoped, tag = 'output window, operand 0, single buffered']
    #allocation3 [shape = 's32[1]{0}', space=sflag, size = 0x4, scoped, tag = 'scoped memory for tpu_custom_call.1']
    %8 = vsyncpa [#allocation3], 0
    // Predicated region
    $region2: #{tpu_custom_call.1} parent=1 // pred_check
      _
    $region3: #{tpu_custom_call.1} parent=1 // pred_check_branch
      %10 = sbr.rel (0) target = $region5
    $region4: #{tpu_custom_call.1} parent=1 // pred_region
      _
    $region5: #{tpu_custom_call.1} parent=1 // pred_fallthru
      _
    // Predicated region
    $region6: #{tpu_custom_call.1} parent=1 // pred_check
      _
    $region7: #{tpu_custom_call.1} parent=1 // pred_check_branch
      %12 = sbr.rel (0) target = $region9
    $region8: #{tpu_custom_call.1} parent=1 // pred_region
      _
    $region9: #{tpu_custom_call.1} parent=1 // pred_fallthru
      _
    // Predicated region
    $region10: #{tpu_custom_call.1} parent=1 // pred_check
      _
    $region11: #{tpu_custom_call.1} parent=1 // pred_check_branch
      %14 = sbr.rel (0) target = $region13
    $region12: #{tpu_custom_call.1} parent=1 // pred_region
      _
    $region13: #{tpu_custom_call.1} parent=1 // pred_fallthru
      _
    %v15 = vld [vmem:[%s2] sm:$0x7]
    %v17 = vrot.slane %v15, 5
    %v19 = vrot.slane %v15, 2
    %v21 = vrot.slane %v15, 7
    %v23 = vrot.slane %v15, 4
    %v25 = vrot.slane %v15, 1
    %v27 = vrot.slane %v15, 6
    %v29 = vrot.slane %v15, 3
    %vm31 = vcmask 1042432
    %v32 = vsel %vm31, %v15, %v17
    %vm33 = vcmask 1045504
    %v34 = vsel %vm33, %v32, %v19
    %vm35 = vcmask 1040384
    %v36 = vsel %vm35, %v19, %v21
    %vm37 = vcmask 1043456
    %v38 = vsel %vm37, %v36, %v23
    %vm39 = vcmask 1046528
    %v40 = vsel %vm39, %v38, %v25
    %vm41 = vcmask 1041408
    %v42 = vsel %vm41, %v25, %v27
    %vm43 = vcmask 1044480
    %v44 = vsel %vm43, %v42, %v29
    %v45 = vld [vmem:[%s0] sm:$0xff]
    %v46 = vld [vmem:[%s0 + $0x8] sm:$0xff]
    %v47 = vld [vmem:[%s0 + $0x10] sm:$0xff]
    %49 = vset.pattern.permute.xlu0 0
    %50 = vperm.xlu0 %49, %v45
    %v51 = vpop.permute.xlu0 %50
    %54 = vset.pattern.permute.xlu0 0
    %55 = vperm.xlu0 %54, %v46
    %v56 = vpop.permute.xlu0 %55
    %59 = vset.pattern.permute.xlu0 0
    %60 = vperm.xlu0 %59, %v47
    %v61 = vpop.permute.xlu0 %60
    %v63 = vmul.f32 %v34, %v51
    %v64 = vmul.f32 %v40, %v56
    %v65 = vmul.f32 %v44, %v61
    %v66 = vld [vmem:[%s1] sm:$0xff]
    %v67 = vld [vmem:[%s1 + $0x8] sm:$0xff]
    %v68 = vld [vmem:[%s1 + $0x10] sm:$0xff]
    %70 = vset.pattern.permute.xlu0 0
    %71 = vperm.xlu0 %70, %v66
    %v72 = vpop.permute.xlu0 %71
    %75 = vset.pattern.permute.xlu0 0
    %76 = vperm.xlu0 %75, %v67
    %v77 = vpop.permute.xlu0 %76
    %80 = vset.pattern.permute.xlu0 0
    %81 = vperm.xlu0 %80, %v68
    %v82 = vpop.permute.xlu0 %81
    %v84 = vadd.f32 %v63, %v72
    %v85 = vadd.f32 %v64, %v77
    %v86 = vadd.f32 %v65, %v82
    %v87 = vand.u32 2147483647, %v84
    %vm88 = vcmp.le.f32.partialorder %v87, 0.7853982
    %vm89 = vcmp.lt.s32.totalorder %v84, 0
    %v90 = vand.u32 %v84, 2139095040
    %v91 = vshrl.u32 %v90, 23
    %v92 = vsub.s32 %v91, 127
    %v93 = vand.u32 2147483647, %v84
    %v94 = vand.u32 %v93, 8388607
    %v95 = vor.u32 %v94, 8388608
    %v96 = vsub.s32 0, %v95
    %v97 = vadd.s32 %v92, 1
    %vm98 = vcmp.gt.s32.totalorder %v97, 0
    %v99 = vsel %vm98, %v97, 0
    %v100 = vshrl.u32 %v99, 5
    %v101 = vand.u32 %v99, 31
    %v102 = vsub.s32 32, %v101
    %v103 = vshrl.u32 683565275, %v102
    %v104 = vshll.u32 683565275, %v101
    %v105 = vshrl.u32 2475754826, %v102
    %v106 = vor.u32 %v104, %v105
    %v107 = vshll.u32 2475754826, %v101
    %v108 = vshrl.u32 2131351028, %v102
    %v109 = vor.u32 %v107, %v108
    %v110 = vshll.u32 2131351028, %v101
    %v111 = vshrl.u32 2102212464, %v102
    %v112 = vor.u32 %v110, %v111
    %v113 = vshll.u32 2102212464, %v101
    %v114 = vshrl.u32 920167782, %v102
    %v115 = vor.u32 %v113, %v114
    %v116 = vshll.u32 920167782, %v101
    %v117 = vshrl.u32 1326507024, %v102
    %v118 = vor.u32 %v116, %v117
    %vm119 = vcmp.lt.s32.totalorder %v100, 1
    %vm120 = vcmp.lt.s32.totalorder %v100, 2
    %vm121 = vcmp.lt.s32.totalorder %v100, 3
    %vm122 = vcmp.lt.s32.totalorder %v100, 4
    %v123 = vsel %vm119, %v103, %v106
    %v124 = vsel %vm122, %v112, 2102212464
    %v125 = vsel %vm121, %v109, %v124
    %v126 = vsel %vm120, %v123, %v125
    %v127 = vsel %vm119, %v106, %v109
    %v128 = vsel %vm122, %v115, 920167782
    %v129 = vsel %vm121, %v112, %v128
    %v130 = vsel %vm120, %v127, %v129
    %v131 = vsel %vm119, %v109, %v112
    %v132 = vsel %vm122, %v118, 1326507024
    %v133 = vsel %vm121, %v115, %v132
    %v134 = vsel %vm120, %v131, %v133
    %v135 = vshll.u32 %v95, 8
    %v136 = vmul.u32.u64.compose %v135, %v134
    %v137 = vextract.low.u32 %v136
    %v138 = vextract.high.u32 %v136
    %v139 = vmul.u32.u64.compose %v135, %v130
    %v140 = vextract.low.u32 %v139
    %v141 = vextract.high.u32 %v139
    %v142 = vmul.u32 %v135, %v126
    %v143 = vadd.s32 %v138, %v140
    %vm144 = vc.u32 %v138, %v140
    %v145 = vadd.s32 %v141, 1
    %v146 = vsel %vm144, %v145, %v141
    %v147 = vadd.s32 %v142, %v146
    %v148 = vadd.s32 %v147, 536870912
    %v149 = vshrl.u32 %v148, 30
    %v150 = vshll.u32 %v149, 30
    %v151 = vsub.s32 %v147, %v150
    %vm152 = vcmp.lt.s32.totalorder %v151, 0
    %v153 = vsub.s32 0, %v151
    %v154 = vsel %vm152, %v153, %v151
    %v155 = vclz %v154
    %v156 = vsub.s32 %v155, 2
    %vm157 = vcmp.gt.s32.totalorder 0, %v156
    %v158 = vsel %vm157, 0, %v156
    %v159 = vsub.s32 32, %v158
    %v160 = vshll.u32 %v151, %v158
    %v161 = vshrl.u32 %v143, %v159
    %v162 = vor.u32 %v160, %v161
    %v163 = vsub.s32 4294967266, %v158
    %v164 = vadd.s32 %v163, 127
    %v165 = vshll.u32 %v164, 23
    %v166 = vor.u32 4788187, %v165
    %v167 = vand.u32 2147483647, %v166
    %v169 = vcvt.s32.f32 %v162
    %v170 = vmul.f32 %v169, %v167
    %v171 = vxor.u32 %v170, 2147483648
    %v172 = vsel %vm89, %v171, %v170
    %v173 = vsub.s32 4, %v149
    %v174 = vsel %vm89, %v173, %v149
    %v175 = vsel %vm88, %v84, %v172
    %v176 = vsel %vm88, 0, %v174
    %v177 = vcosq.f32.pop %v175
    %v178 = vsinq.f32.pop %v175
    %vm179 = vweird.f32 %v84
    %v180 = vadd.s32 %v176, 3
    %v181 = vand.u32 %v180, 3
    %vm182 = vcmp.lt.s32.totalorder %v181, 2
    %vm183 = vcmp.eq.s32.totalorder %v181, 0
    %v184 = vxor.u32 %v178, 2147483648
    %v185 = vsel %vm183, %v177, %v184
    %vm186 = vcmp.eq.s32.totalorder %v181, 2
    %v187 = vxor.u32 %v177, 2147483648
    %v188 = vsel %vm186, %v187, %v178
    %v189 = vsel %vm182, %v185, %v188
    %v190 = vsel %vm179, nan, %v189
    %v191 = vand.u32 2147483647, %v85
    %vm192 = vcmp.le.f32.partialorder %v191, 0.7853982
    %vm193 = vcmp.lt.s32.totalorder %v85, 0
    %v194 = vand.u32 %v85, 2139095040
    %v195 = vshrl.u32 %v194, 23
    %v196 = vsub.s32 %v195, 127
    %v197 = vand.u32 2147483647, %v85
    %v198 = vand.u32 %v197, 8388607
    %v199 = vor.u32 %v198, 8388608
    %v200 = vsub.s32 0, %v199
    %v201 = vadd.s32 %v196, 1
    %vm202 = vcmp.gt.s32.totalorder %v201, 0
    %v203 = vsel %vm202, %v201, 0
    %v204 = vshrl.u32 %v203, 5
    %v205 = vand.u32 %v203, 31
    %v206 = vsub.s32 32, %v205
    %v207 = vshrl.u32 683565275, %v206
    %v208 = vshll.u32 683565275, %v205
    %v209 = vshrl.u32 2475754826, %v206
    %v210 = vor.u32 %v208, %v209
    %v211 = vshll.u32 2475754826, %v205
    %v212 = vshrl.u32 2131351028, %v206
    %v213 = vor.u32 %v211, %v212
    %v214 = vshll.u32 2131351028, %v205
    %v215 = vshrl.u32 2102212464, %v206
    %v216 = vor.u32 %v214, %v215
    %v217 = vshll.u32 2102212464, %v205
    %v218 = vshrl.u32 920167782, %v206
    %v219 = vor.u32 %v217, %v218
    %v220 = vshll.u32 920167782, %v205
    %v221 = vshrl.u32 1326507024, %v206
    %v222 = vor.u32 %v220, %v221
    %vm223 = vcmp.lt.s32.totalorder %v204, 1
    %vm224 = vcmp.lt.s32.totalorder %v204, 2
    %vm225 = vcmp.lt.s32.totalorder %v204, 3
    %vm226 = vcmp.lt.s32.totalorder %v204, 4
    %v227 = vsel %vm223, %v207, %v210
    %v228 = vsel %vm226, %v216, 2102212464
    %v229 = vsel %vm225, %v213, %v228
    %v230 = vsel %vm224, %v227, %v229
    %v231 = vsel %vm223, %v210, %v213
    %v232 = vsel %vm226, %v219, 920167782
    %v233 = vsel %vm225, %v216, %v232
    %v234 = vsel %vm224, %v231, %v233
    %v235 = vsel %vm223, %v213, %v216
    %v236 = vsel %vm226, %v222, 1326507024
    %v237 = vsel %vm225, %v219, %v236
    %v238 = vsel %vm224, %v235, %v237
    %v239 = vshll.u32 %v199, 8
    %v240 = vmul.u32.u64.compose %v239, %v238
    %v241 = vextract.low.u32 %v240
    %v242 = vextract.high.u32 %v240
    %v243 = vmul.u32.u64.compose %v239, %v234
    %v244 = vextract.low.u32 %v243
    %v245 = vextract.high.u32 %v243
    %v246 = vmul.u32 %v239, %v230
    %v247 = vadd.s32 %v242, %v244
    %vm248 = vc.u32 %v242, %v244
    %v249 = vadd.s32 %v245, 1
    %v250 = vsel %vm248, %v249, %v245
    %v251 = vadd.s32 %v246, %v250
    %v252 = vadd.s32 %v251, 536870912
    %v253 = vshrl.u32 %v252, 30
    %v254 = vshll.u32 %v253, 30
    %v255 = vsub.s32 %v251, %v254
    %vm256 = vcmp.lt.s32.totalorder %v255, 0
    %v257 = vsub.s32 0, %v255
    %v258 = vsel %vm256, %v257, %v255
    %v259 = vclz %v258
    %v260 = vsub.s32 %v259, 2
    %vm261 = vcmp.gt.s32.totalorder 0, %v260
    %v262 = vsel %vm261, 0, %v260
    %v263 = vsub.s32 32, %v262
    %v264 = vshll.u32 %v255, %v262
    %v265 = vshrl.u32 %v247, %v263
    %v266 = vor.u32 %v264, %v265
    %v267 = vsub.s32 4294967266, %v262
    %v268 = vadd.s32 %v267, 127
    %v269 = vshll.u32 %v268, 23
    %v270 = vor.u32 4788187, %v269
    %v271 = vand.u32 2147483647, %v270
    %v273 = vcvt.s32.f32 %v266
    %v274 = vmul.f32 %v273, %v271
    %v275 = vxor.u32 %v274, 2147483648
    %v276 = vsel %vm193, %v275, %v274
    %v277 = vsub.s32 4, %v253
    %v278 = vsel %vm193, %v277, %v253
    %v279 = vsel %vm192, %v85, %v276
    %v280 = vsel %vm192, 0, %v278
    %v281 = vcosq.f32.pop %v279
    %v282 = vsinq.f32.pop %v279
    %vm283 = vweird.f32 %v85
    %v284 = vadd.s32 %v280, 3
    %v285 = vand.u32 %v284, 3
    %vm286 = vcmp.lt.s32.totalorder %v285, 2
    %vm287 = vcmp.eq.s32.totalorder %v285, 0
    %v288 = vxor.u32 %v282, 2147483648
    %v289 = vsel %vm287, %v281, %v288
    %vm290 = vcmp.eq.s32.totalorder %v285, 2
    %v291 = vxor.u32 %v281, 2147483648
    %v292 = vsel %vm290, %v291, %v282
    %v293 = vsel %vm286, %v289, %v292
    %v294 = vsel %vm283, nan, %v293
    %v295 = vand.u32 2147483647, %v86
    %vm296 = vcmp.le.f32.partialorder %v295, 0.7853982
    %vm297 = vcmp.lt.s32.totalorder %v86, 0
    %v298 = vand.u32 %v86, 2139095040
    %v299 = vshrl.u32 %v298, 23
    %v300 = vsub.s32 %v299, 127
    %v301 = vand.u32 2147483647, %v86
    %v302 = vand.u32 %v301, 8388607
    %v303 = vor.u32 %v302, 8388608
    %v304 = vsub.s32 0, %v303
    %v305 = vadd.s32 %v300, 1
    %vm306 = vcmp.gt.s32.totalorder %v305, 0
    %v307 = vsel %vm306, %v305, 0
    %v308 = vshrl.u32 %v307, 5
    %v309 = vand.u32 %v307, 31
    %v310 = vsub.s32 32, %v309
    %v311 = vshrl.u32 683565275, %v310
    %v312 = vshll.u32 683565275, %v309
    %v313 = vshrl.u32 2475754826, %v310
    %v314 = vor.u32 %v312, %v313
    %v315 = vshll.u32 2475754826, %v309
    %v316 = vshrl.u32 2131351028, %v310
    %v317 = vor.u32 %v315, %v316
    %v318 = vshll.u32 2131351028, %v309
    %v319 = vshrl.u32 2102212464, %v310
    %v320 = vor.u32 %v318, %v319
    %v321 = vshll.u32 2102212464, %v309
    %v322 = vshrl.u32 920167782, %v310
    %v323 = vor.u32 %v321, %v322
    %v324 = vshll.u32 920167782, %v309
    %v325 = vshrl.u32 1326507024, %v310
    %v326 = vor.u32 %v324, %v325
    %vm327 = vcmp.lt.s32.totalorder %v308, 1
    %vm328 = vcmp.lt.s32.totalorder %v308, 2
    %vm329 = vcmp.lt.s32.totalorder %v308, 3
    %vm330 = vcmp.lt.s32.totalorder %v308, 4
    %v331 = vsel %vm327, %v311, %v314
    %v332 = vsel %vm330, %v320, 2102212464
    %v333 = vsel %vm329, %v317, %v332
    %v334 = vsel %vm328, %v331, %v333
    %v335 = vsel %vm327, %v314, %v317
    %v336 = vsel %vm330, %v323, 920167782
    %v337 = vsel %vm329, %v320, %v336
    %v338 = vsel %vm328, %v335, %v337
    %v339 = vsel %vm327, %v317, %v320
    %v340 = vsel %vm330, %v326, 1326507024
    %v341 = vsel %vm329, %v323, %v340
    %v342 = vsel %vm328, %v339, %v341
    %v343 = vshll.u32 %v303, 8
    %v344 = vmul.u32.u64.compose %v343, %v342
    %v345 = vextract.low.u32 %v344
    %v346 = vextract.high.u32 %v344
    %v347 = vmul.u32.u64.compose %v343, %v338
    %v348 = vextract.low.u32 %v347
    %v349 = vextract.high.u32 %v347
    %v350 = vmul.u32 %v343, %v334
    %v351 = vadd.s32 %v346, %v348
    %vm352 = vc.u32 %v346, %v348
    %v353 = vadd.s32 %v349, 1
    %v354 = vsel %vm352, %v353, %v349
    %v355 = vadd.s32 %v350, %v354
    %v356 = vadd.s32 %v355, 536870912
    %v357 = vshrl.u32 %v356, 30
    %v358 = vshll.u32 %v357, 30
    %v359 = vsub.s32 %v355, %v358
    %vm360 = vcmp.lt.s32.totalorder %v359, 0
    %v361 = vsub.s32 0, %v359
    %v362 = vsel %vm360, %v361, %v359
    %v363 = vclz %v362
    %v364 = vsub.s32 %v363, 2
    %vm365 = vcmp.gt.s32.totalorder 0, %v364
    %v366 = vsel %vm365, 0, %v364
    %v367 = vsub.s32 32, %v366
    %v368 = vshll.u32 %v359, %v366
    %v369 = vshrl.u32 %v351, %v367
    %v370 = vor.u32 %v368, %v369
    %v371 = vsub.s32 4294967266, %v366
    %v372 = vadd.s32 %v371, 127
    %v373 = vshll.u32 %v372, 23
    %v374 = vor.u32 4788187, %v373
    %v375 = vand.u32 2147483647, %v374
    %v377 = vcvt.s32.f32 %v370
    %v378 = vmul.f32 %v377, %v375
    %v379 = vxor.u32 %v378, 2147483648
    %v380 = vsel %vm297, %v379, %v378
    %v381 = vsub.s32 4, %v357
    %v382 = vsel %vm297, %v381, %v357
    %v383 = vsel %vm296, %v86, %v380
    %v384 = vsel %vm296, 0, %v382
    %v385 = vcosq.f32.pop %v383
    %v386 = vsinq.f32.pop %v383
    %vm387 = vweird.f32 %v86
    %v388 = vadd.s32 %v384, 3
    %v389 = vand.u32 %v388, 3
    %vm390 = vcmp.lt.s32.totalorder %v389, 2
    %vm391 = vcmp.eq.s32.totalorder %v389, 0
    %v392 = vxor.u32 %v386, 2147483648
    %v393 = vsel %vm391, %v385, %v392
    %vm394 = vcmp.eq.s32.totalorder %v389, 2
    %v395 = vxor.u32 %v385, 2147483648
    %v396 = vsel %vm394, %v395, %v386
    %v397 = vsel %vm390, %v393, %v396
    %v398 = vsel %vm387, nan, %v397
    %v402 = vrot.slane %v190, 5
    %v403 = vrot.slane %v294, 5
    %v404 = vsel %vm31, %v402, %v403
    %v405 = vrot.slane %v398, 5
    %v406 = vsel %vm31, %v403, %v405
    %v411 = vsel %vm31, %v15, %v402
    %412 = vst [vmem:[#allocation2] sm:$0xff] %v411
    %413 = vst [vmem:[#allocation2 + $0x8] sm:$0xff] %v404
    %414 = vst [vmem:[#allocation2 + $0x10] sm:$0xff] %v406
    %415 = vst [vmem:[#allocation2 + $0x18] sm:$0x7] %v405
    // Predicated region
    $region14: #{tpu_custom_call.1} parent=1 // pred_check
      _
    $region15: #{tpu_custom_call.1} parent=1 // pred_check_branch
      %417 = sbr.rel (0) target = $region17
    $region16: #{tpu_custom_call.1} parent=1 // pred_region
      %s419 = ssub.s32 512, 512
      %420 = vsyncadd [#allocation3], %s419
      %s421 = sshll.u32 [#allocation2], 4
      %s422 = int_to_ptr.vmem [resolvable:$true] %s421
      %427 = dma.vmem_to_hbm [thread:$0]  %s422, 512, %s3, [#allocation3], 128, 128, 8
    $region17: #{tpu_custom_call.1} parent=1 // pred_fallthru
      _
    // Predicated region
    $region18: #{tpu_custom_call.1} parent=1 // pred_check
      _
    $region19: #{tpu_custom_call.1} parent=1 // pred_check_branch
      %429 = sbr.rel (0) target = $region21
    $region20: #{tpu_custom_call.1} parent=1 // pred_region
      %430 = dma.done [#allocation3], 512
    $region21: #{tpu_custom_call.1} parent=1 // pred_fallthru
      _
    %431 = vsyncpa [#allocation3], 1

</llo_original>
